<compile_context>
chip_gen: v7x
topology: tpu7x:2x2x1
jax: 0.10.0
libtpu: 0.0.40
codegen_flags: <defaults>
</compile_context>

<pallas_src>
import math
import jax
import jax.numpy as jnp
from jax.experimental import pallas as pl
from jax.experimental.pallas import tpu as pltpu

NEMB = 42                # nemb in the PyTorch script
NHEAD = 1                # nhead
HEADSIZ = NEMB // NHEAD  # 42
HIDDEN = 4 * NEMB        # 168
CP = 128                 # padded channel width (lane-dense)
HP = 128                 # padded per-head width
FP = 256                 # padded FFN hidden width
LN_EPS = 1e-5
NEG_BIG = -1e30          # finite "-inf" for the causal mask


def _block_kernel(x_ref,        # (Bb, T, CP)   zero-padded beyond NEMB
                  vec_ref,      # (6, CP): ln1_g, ln1_b, ln2_g, ln2_b, bp, bf2
                  bf1_ref,      # (1, FP)
                  win_ref,      # (CP, 3*HP + FP): [Wq*scale | Wk | Wv | Wf1]
                  wout_ref,     # (HP + FP, CP):   [Wp ; Wf2]
                  out_ref):     # (Bb, T, CP)
    x = x_ref[...].astype(jnp.float32)                      # (Bb, T, CP)
    Bb, T, CPd = x.shape

    g1 = vec_ref[0]
    b1 = vec_ref[1]
    g2 = vec_ref[2]
    b2 = vec_ref[3]
    bp = vec_ref[4]
    bf2 = vec_ref[5]

    # lane mask selecting the true channels (padded lanes zeroed for LN stats)
    lane = jax.lax.broadcasted_iota(jnp.int32, (1, 1, CPd), 2)
    cmask = (lane < NEMB).astype(jnp.float32)
    inv_c = jnp.float32(1.0 / NEMB)

    def layernorm(v, g, b):
        mu = jnp.sum(v, axis=-1, keepdims=True) * inv_c     # padded lanes are 0
        d = (v - mu) * cmask
        var = jnp.sum(d * d, axis=-1, keepdims=True) * inv_c
        return d * jax.lax.rsqrt(var + LN_EPS) * g + b      # padded lanes -> 0

    win = win_ref[...]
    wout = wout_ref[...]

    # ---- LN1 + fused QKV projection (batch*time collapsed into M) ----
    h = layernorm(x, g1, b1).reshape(Bb * T, CPd)
    qkv = jnp.dot(h, win[:, :3 * HP], preferred_element_type=jnp.float32)
    q = qkv[:, :HP].reshape(Bb, T, HP)                      # Q pre-scaled by 1/sqrt(d)
    k = qkv[:, HP:2 * HP].reshape(Bb, T, HP)
    v = qkv[:, 2 * HP:3 * HP].reshape(Bb, T, HP)

    # ---- single-head causal softmax attention ----
    s = jnp.einsum('bqh,bkh->bqk', q, k,
                   preferred_element_type=jnp.float32)      # (Bb, T, T)
    rows = jax.lax.broadcasted_iota(jnp.int32, (T, T), 0)
    cols = jax.lax.broadcasted_iota(jnp.int32, (T, T), 1)
    s = jnp.where((cols <= rows)[None], s, jnp.float32(NEG_BIG))
    s = s - jnp.max(s, axis=-1, keepdims=True)
    p = jnp.exp(s)
    p = p / jnp.sum(p, axis=-1, keepdims=True)

    attn = jnp.einsum('bqk,bkh->bqh', p, v,
                      preferred_element_type=jnp.float32)   # (Bb, T, HP)
    sa = jnp.dot(attn.reshape(Bb * T, HP), wout[:HP],
                 preferred_element_type=jnp.float32).reshape(Bb, T, CPd) + bp

    x1 = x + sa                                             # residual 1 (pad lanes stay 0)

    # ---- LN2 + FFN: Linear -> GELU(tanh) -> Linear (dropout = 0.0) ----
    h2 = layernorm(x1, g2, b2).reshape(Bb * T, CPd)
    z = jnp.dot(h2, win[:, 3 * HP:],
                preferred_element_type=jnp.float32) + bf1_ref[0]
    c0 = 0.7978845608028654                                 # sqrt(2/pi); tanh -> EUP
    z = 0.5 * z * (1.0 + jnp.tanh(c0 * (z + 0.044715 * z * z * z)))
    f = jnp.dot(z, wout[HP:],
                preferred_element_type=jnp.float32).reshape(Bb, T, CPd) + bf2

    out_ref[...] = (x1 + f).astype(out_ref.dtype)           # residual 2


def prepare_params(p):
    """One-time packing / zero-padding of the module parameters.

    Call this once at parameter-init time; the per-call wrapper only consumes
    the packed slabs (no per-forward concatenates / scales)."""
    scale = jnp.float32(HEADSIZ ** -0.5)

    def pad_cols(w, to):
        return jnp.pad(w, ((0, 0), (0, to - w.shape[1])))

    def pad_rows(w, to):
        return jnp.pad(w, ((0, to - w.shape[0]), (0, 0)))

    wq = pad_cols(p["wq"] * scale, HP)                      # (C, 128), Q pre-scaled
    wk = pad_cols(p["wk"], HP)
    wv = pad_cols(p["wv"], HP)
    wf1 = pad_cols(p["wf1"], FP)                            # (C, 256)
    w_in = pad_rows(jnp.concatenate([wq, wk, wv, wf1], axis=1), CP)  # (128, 640)

    wp = pad_rows(pad_cols(p["wp"], CP), HP)                # (128, 128)
    wf2 = pad_rows(pad_cols(p["wf2"], CP), FP)              # (256, 128)
    w_out = jnp.concatenate([wp, wf2], axis=0)              # (384, 128)

    vecs = jnp.concatenate(
        [pad_cols(p["ln1_g"], CP), pad_cols(p["ln1_b"], CP),
         pad_cols(p["ln2_g"], CP), pad_cols(p["ln2_b"], CP),
         pad_cols(p["bp"], CP), pad_cols(p["bf2"], CP)], axis=0)     # (6, 128)

    bf1 = pad_cols(p["bf1"], FP)                            # (1, 256)
    return {"vecs": vecs, "bf1": bf1, "w_in": w_in, "w_out": w_out}


def _forward(x, packed):
    B, T, C = x.shape
    assert C == NEMB

    # Single grid step unless v7x's two TensorCores each get substantial work;
    # on single-TC v5e/v6e (and at small shapes on v7x) one step always wins.
    # TODO(synk): detect the 2-TC chip via pltpu.get_tpu_info()/ChipVersion
    # instead of gating purely on the per-core work size.
    per_core_bytes = (B * T * CP * 4) // 2
    n_steps = 2 if (B % 2 == 0 and per_core_bytes >= (1 << 20)) else 1
    b_blk = B // n_steps

    xp = jnp.pad(x, ((0, 0), (0, 0), (0, CP - C)))          # lane-dense input

    def full2d(shape):
        return pl.BlockSpec(shape, lambda i: (0, 0))

    out = pl.pallas_call(
        _block_kernel,
        out_shape=jax.ShapeDtypeStruct((B, T, CP), x.dtype),
        grid_spec=pltpu.PrefetchScalarGridSpec(
            num_scalar_prefetch=0,
            grid=(n_steps,),
            in_specs=[
                pl.BlockSpec((b_blk, T, CP), lambda i: (i, 0, 0)),   # x (padded)
                full2d((6, CP)),                                     # LN/bias vecs
                full2d((1, FP)),                                     # bf1
                full2d((CP, 3 * HP + FP)),                           # [Wqkv | Wf1]
                full2d((HP + FP, CP)),                               # [Wp ; Wf2]
            ],
            out_specs=pl.BlockSpec((b_blk, T, CP), lambda i: (i, 0, 0)),
        ),
        compiler_params=pltpu.CompilerParams(
            dimension_semantics=("parallel",)),
    )(xp, packed["vecs"], packed["bf1"], packed["w_in"], packed["w_out"])
    return out[..., :C]


block_forward = jax.jit(_forward)


def reference_forward(x, p):
    """Pure-JAX reference mirroring the PyTorch module (dropout = 0)."""
    def ln(v, g, b):
        mu = jnp.mean(v, -1, keepdims=True)
        var = jnp.mean((v - mu) ** 2, -1, keepdims=True)
        return (v - mu) * jax.lax.rsqrt(var + LN_EPS) * g[0] + b[0]

    h = ln(x, p["ln1_g"], p["ln1_b"])
    q = h @ p["wq"]; k = h @ p["wk"]; v = h @ p["wv"]
    s = (q @ jnp.swapaxes(k, -1, -2)) * (HEADSIZ ** -0.5)
    T = x.shape[1]
    mask = jnp.tril(jnp.ones((T, T), bool))
    s = jnp.where(mask, s, -jnp.inf)
    w = jax.nn.softmax(s, axis=-1)
    attn = w @ v
    sa = attn @ p["wp"] + p["bp"][0]
    x1 = x + sa
    h2 = ln(x1, p["ln2_g"], p["ln2_b"])
    z = h2 @ p["wf1"] + p["bf1"][0]
    c = math.sqrt(2.0 / math.pi)
    z = 0.5 * z * (1.0 + jnp.tanh(c * (z + 0.044715 * z ** 3)))
    f = z @ p["wf2"] + p["bf2"][0]
    return x1 + f


def make_params(key):
    ks = jax.random.split(key, 9)
    C, H, F = NEMB, HEADSIZ, HIDDEN
    scale = 0.02
    return {
        "ln1_g": jnp.ones((1, C), jnp.float32),
        "ln1_b": jnp.zeros((1, C), jnp.float32),
        "wq": scale * jax.random.normal(ks[0], (C, H), jnp.float32),
        "wk": scale * jax.random.normal(ks[1], (C, H), jnp.float32),
        "wv": scale * jax.random.normal(ks[2], (C, H), jnp.float32),
        "wp": scale * jax.random.normal(ks[3], (H * NHEAD, C), jnp.float32),
        "bp": scale * jax.random.normal(ks[4], (1, C), jnp.float32),
        "ln2_g": jnp.ones((1, C), jnp.float32),
        "ln2_b": jnp.zeros((1, C), jnp.float32),
        "wf1": scale * jax.random.normal(ks[5], (C, F), jnp.float32),
        "bf1": scale * jax.random.normal(ks[6], (1, F), jnp.float32),
        "wf2": scale * jax.random.normal(ks[7], (F, C), jnp.float32),
        "bf2": scale * jax.random.normal(ks[8], (1, C), jnp.float32),
    }


if __name__ == "__main__":
    key = jax.random.PRNGKey(0)
    k_x, k_p = jax.random.split(key)

    B, T = 2, 8                       # small shapes consistent with (B, T, nemb)
    x = jax.random.normal(k_x, (B, T, NEMB), jnp.float32)
    params = make_params(k_p)
    packed = prepare_params(params)   # one-time (init-time) packing, not per-call

    out = block_forward(x, packed)
    out = jax.block_until_ready(out)

    ref = reference_forward(x, params)
    assert out.shape == (B, T, NEMB)
    assert jnp.allclose(out, ref, atol=1e-4, rtol=1e-4)

    print("KERNEL_OK")
</pallas_src>

<mosaic_0001>
module attributes {stable_mosaic.version = 11 : i64} {
  func.func @_block_kernel(%arg0: i32, %arg1: memref<2x8x128xf32, #tpu.memory_space<vmem>>, %arg2: memref<6x128xf32, #tpu.memory_space<vmem>>, %arg3: memref<1x256xf32, #tpu.memory_space<vmem>>, %arg4: memref<128x640xf32, #tpu.memory_space<vmem>>, %arg5: memref<384x128xf32, #tpu.memory_space<vmem>>, %arg6: memref<2x8x128xf32, #tpu.memory_space<vmem>>) attributes {dimension_semantics = [#tpu.dimension_semantics<parallel>], iteration_bounds = array<i64: 1>, scalar_prefetch = 0 : i64, scratch_operands = 0 : i64, tpu.core_type = #tpu.core_type<tc>, window_params = [{transform_indices = @transform_0, window_bounds = array<i64: 2, 8, 128>}, {pipeline_mode = #tpu.pipeline_mode<synchronous>, transform_indices = @transform_1, window_bounds = array<i64: 6, 128>}, {pipeline_mode = #tpu.pipeline_mode<synchronous>, transform_indices = @transform_2, window_bounds = array<i64: 1, 256>}, {pipeline_mode = #tpu.pipeline_mode<synchronous>, transform_indices = @transform_3, window_bounds = array<i64: 128, 640>}, {pipeline_mode = #tpu.pipeline_mode<synchronous>, transform_indices = @transform_4, window_bounds = array<i64: 384, 128>}, {transform_indices = @transform_5, window_bounds = array<i64: 2, 8, 128>}]} {
    %c0 = arith.constant 0 : index
    %c0_0 = arith.constant 0 : index
    %c0_1 = arith.constant 0 : index
    %0 = vector.load %arg1[%c0, %c0_0, %c0_1] : memref<2x8x128xf32, #tpu.memory_space<vmem>>, vector<2x8x128xf32>
    %c0_2 = arith.constant 0 : index
    %c0_3 = arith.constant 0 : index
    %1 = vector.load %arg2[%c0_2, %c0_3] : memref<6x128xf32, #tpu.memory_space<vmem>>, vector<1x128xf32>
    %2 = vector.shape_cast %1 : vector<1x128xf32> to vector<128xf32>
    %c1 = arith.constant 1 : index
    %c0_4 = arith.constant 0 : index
    %3 = vector.load %arg2[%c1, %c0_4] : memref<6x128xf32, #tpu.memory_space<vmem>>, vector<1x128xf32>
    %4 = vector.shape_cast %3 : vector<1x128xf32> to vector<128xf32>
    %c2 = arith.constant 2 : index
    %c0_5 = arith.constant 0 : index
    %5 = vector.load %arg2[%c2, %c0_5] : memref<6x128xf32, #tpu.memory_space<vmem>>, vector<1x128xf32>
    %6 = vector.shape_cast %5 : vector<1x128xf32> to vector<128xf32>
    %c3 = arith.constant 3 : index
    %c0_6 = arith.constant 0 : index
    %7 = vector.load %arg2[%c3, %c0_6] : memref<6x128xf32, #tpu.memory_space<vmem>>, vector<1x128xf32>
    %8 = vector.shape_cast %7 : vector<1x128xf32> to vector<128xf32>
    %c4 = arith.constant 4 : index
    %c0_7 = arith.constant 0 : index
    %9 = vector.load %arg2[%c4, %c0_7] : memref<6x128xf32, #tpu.memory_space<vmem>>, vector<1x128xf32>
    %10 = vector.shape_cast %9 : vector<1x128xf32> to vector<128xf32>
    %c5 = arith.constant 5 : index
    %c0_8 = arith.constant 0 : index
    %11 = vector.load %arg2[%c5, %c0_8] : memref<6x128xf32, #tpu.memory_space<vmem>>, vector<1x128xf32>
    %12 = vector.shape_cast %11 : vector<1x128xf32> to vector<128xf32>
    %13 = tpu.iota {dimensions = array<i32: 2>} : vector<1x1x128xi32>
    %c42_i32 = arith.constant 42 : i32
    %14 = vector.broadcast %c42_i32 : i32 to vector<1x1x128xi32>
    %15 = arith.cmpi slt, %13, %14 : vector<1x1x128xi32>
    %16 = arith.extui %15 : vector<1x1x128xi1> to vector<1x1x128xi32>
    %17 = arith.sitofp %16 : vector<1x1x128xi32> to vector<1x1x128xf32>
    %c0_9 = arith.constant 0 : index
    %c0_10 = arith.constant 0 : index
    %18 = vector.load %arg4[%c0_9, %c0_10] : memref<128x640xf32, #tpu.memory_space<vmem>>, vector<128x640xf32>
    %c0_11 = arith.constant 0 : index
    %c0_12 = arith.constant 0 : index
    %19 = vector.load %arg5[%c0_11, %c0_12] : memref<384x128xf32, #tpu.memory_space<vmem>>, vector<384x128xf32>
    %cst = arith.constant dense<0.000000e+00> : vector<2x8xf32>
    %20 = vector.multi_reduction <add>, %0, %cst [2] : vector<2x8x128xf32> to vector<2x8xf32>
    %21 = vector.shape_cast %20 : vector<2x8xf32> to vector<2x8x1xf32>
    %cst_13 = arith.constant 0.0238095243 : f32
    %22 = vector.broadcast %cst_13 : f32 to vector<2x8x1xf32>
    %23 = arith.mulf %21, %22 : vector<2x8x1xf32>
    %24 = vector.broadcast %23 : vector<2x8x1xf32> to vector<2x8x128xf32>
    %25 = arith.subf %0, %24 : vector<2x8x128xf32>
    %26 = vector.broadcast %17 : vector<1x1x128xf32> to vector<2x8x128xf32>
    %27 = arith.mulf %25, %26 : vector<2x8x128xf32>
    %28 = arith.mulf %27, %27 : vector<2x8x128xf32>
    %cst_14 = arith.constant dense<0.000000e+00> : vector<2x8xf32>
    %29 = vector.multi_reduction <add>, %28, %cst_14 [2] : vector<2x8x128xf32> to vector<2x8xf32>
    %30 = vector.shape_cast %29 : vector<2x8xf32> to vector<2x8x1xf32>
    %cst_15 = arith.constant 0.0238095243 : f32
    %31 = vector.broadcast %cst_15 : f32 to vector<2x8x1xf32>
    %32 = arith.mulf %30, %31 : vector<2x8x1xf32>
    %cst_16 = arith.constant 9.99999974E-6 : f32
    %33 = vector.broadcast %cst_16 : f32 to vector<2x8x1xf32>
    %34 = arith.addf %32, %33 : vector<2x8x1xf32>
    %35 = math.rsqrt %34 : vector<2x8x1xf32>
    %36 = vector.broadcast %35 : vector<2x8x1xf32> to vector<2x8x128xf32>
    %37 = arith.mulf %27, %36 : vector<2x8x128xf32>
    %38 = vector.shape_cast %2 : vector<128xf32> to vector<1x1x128xf32>
    %39 = vector.broadcast %38 : vector<1x1x128xf32> to vector<2x8x128xf32>
    %40 = arith.mulf %37, %39 : vector<2x8x128xf32>
    %41 = vector.shape_cast %4 : vector<128xf32> to vector<1x1x128xf32>
    %42 = vector.broadcast %41 : vector<1x1x128xf32> to vector<2x8x128xf32>
    %43 = arith.addf %40, %42 : vector<2x8x128xf32>
    %44 = vector.shape_cast %43 : vector<2x8x128xf32> to vector<16x128xf32>
    %45 = vector.extract_strided_slice %18 {offsets = [0, 0], sizes = [128, 384], strides = [1, 1]} : vector<128x640xf32> to vector<128x384xf32>
    %cst_17 = arith.constant dense<0.000000e+00> : vector<16x384xf32>
    %46 = tpu.matmul %44, %45, %cst_17 {dimension_numbers = #tpu.dot_dimension_numbers<[1], [0], [0], [1], [0, 0, 1, 1], [], []>} : vector<16x128xf32>, vector<128x384xf32>, vector<16x384xf32> -> vector<16x384xf32>
    %47 = vector.extract_strided_slice %46 {offsets = [0, 0], sizes = [16, 128], strides = [1, 1]} : vector<16x384xf32> to vector<16x128xf32>
    %48 = vector.shape_cast %47 : vector<16x128xf32> to vector<2x8x128xf32>
    %49 = vector.extract_strided_slice %46 {offsets = [0, 128], sizes = [16, 128], strides = [1, 1]} : vector<16x384xf32> to vector<16x128xf32>
    %50 = vector.shape_cast %49 : vector<16x128xf32> to vector<2x8x128xf32>
    %51 = vector.extract_strided_slice %46 {offsets = [0, 256], sizes = [16, 128], strides = [1, 1]} : vector<16x384xf32> to vector<16x128xf32>
    %52 = vector.shape_cast %51 : vector<16x128xf32> to vector<2x8x128xf32>
    "tpu.trace_start"() <{level = 10 : i32, message = "bqh,bkh->bqk"}> : () -> ()
    %cst_18 = arith.constant dense<0.000000e+00> : vector<2x8x8xf32>
    %53 = tpu.matmul %48, %50, %cst_18 {dimension_numbers = #tpu.dot_dimension_numbers<[2], [2], [1], [1], [0, 0, 0, 1, 1, 1], [0], [0]>} : vector<2x8x128xf32>, vector<2x8x128xf32>, vector<2x8x8xf32> -> vector<2x8x8xf32>
    "tpu.trace_stop"() : () -> ()
    %54 = tpu.iota {dimensions = array<i32: 0>} : vector<8x8xi32>
    %55 = tpu.iota {dimensions = array<i32: 1>} : vector<8x8xi32>
    %56 = arith.cmpi sle, %55, %54 : vector<8x8xi32>
    %57 = vector.shape_cast %56 : vector<8x8xi1> to vector<1x8x8xi1>
    %cst_19 = arith.constant -1.000000e+30 : f32
    %58 = vector.shape_cast %57 : vector<1x8x8xi1> to vector<1x8x8xi1>
    %59 = vector.broadcast %58 : vector<1x8x8xi1> to vector<2x8x8xi1>
    %60 = vector.broadcast %cst_19 : f32 to vector<2x8x8xf32>
    %61 = arith.select %59, %53, %60 : vector<2x8x8xi1>, vector<2x8x8xf32>
    %cst_20 = arith.constant dense<0xFF800000> : vector<2x8xf32>
    %62 = vector.multi_reduction <maximumf>, %61, %cst_20 [2] : vector<2x8x8xf32> to vector<2x8xf32>
    %63 = vector.shape_cast %62 : vector<2x8xf32> to vector<2x8x1xf32>
    %64 = vector.broadcast %63 : vector<2x8x1xf32> to vector<2x8x8xf32>
    %65 = arith.subf %61, %64 : vector<2x8x8xf32>
    %66 = math.exp %65 : vector<2x8x8xf32>
    %cst_21 = arith.constant dense<0.000000e+00> : vector<2x8xf32>
    %67 = vector.multi_reduction <add>, %66, %cst_21 [2] : vector<2x8x8xf32> to vector<2x8xf32>
    %68 = vector.shape_cast %67 : vector<2x8xf32> to vector<2x8x1xf32>
    %69 = vector.broadcast %68 : vector<2x8x1xf32> to vector<2x8x8xf32>
    %70 = arith.divf %66, %69 : vector<2x8x8xf32>
    "tpu.trace_start"() <{level = 10 : i32, message = "bqk,bkh->bqh"}> : () -> ()
    %cst_22 = arith.constant dense<0.000000e+00> : vector<2x8x128xf32>
    %71 = tpu.matmul %70, %52, %cst_22 {dimension_numbers = #tpu.dot_dimension_numbers<[2], [1], [1], [2], [0, 0, 0, 1, 1, 2], [0], [0]>} : vector<2x8x8xf32>, vector<2x8x128xf32>, vector<2x8x128xf32> -> vector<2x8x128xf32>
    "tpu.trace_stop"() : () -> ()
    %72 = vector.shape_cast %71 : vector<2x8x128xf32> to vector<16x128xf32>
    %73 = vector.extract_strided_slice %19 {offsets = [0, 0], sizes = [128, 128], strides = [1, 1]} : vector<384x128xf32> to vector<128x128xf32>
    %cst_23 = arith.constant dense<0.000000e+00> : vector<16x128xf32>
    %74 = tpu.matmul %72, %73, %cst_23 {dimension_numbers = #tpu.dot_dimension_numbers<[1], [0], [0], [1], [0, 0, 1, 1], [], []>} : vector<16x128xf32>, vector<128x128xf32>, vector<16x128xf32> -> vector<16x128xf32>
    %75 = vector.shape_cast %74 : vector<16x128xf32> to vector<2x8x128xf32>
    %76 = vector.shape_cast %10 : vector<128xf32> to vector<1x1x128xf32>
    %77 = vector.broadcast %76 : vector<1x1x128xf32> to vector<2x8x128xf32>
    %78 = arith.addf %75, %77 : vector<2x8x128xf32>
    %79 = arith.addf %0, %78 : vector<2x8x128xf32>
    %cst_24 = arith.constant dense<0.000000e+00> : vector<2x8xf32>
    %80 = vector.multi_reduction <add>, %79, %cst_24 [2] : vector<2x8x128xf32> to vector<2x8xf32>
    %81 = vector.shape_cast %80 : vector<2x8xf32> to vector<2x8x1xf32>
    %cst_25 = arith.constant 0.0238095243 : f32
    %82 = vector.broadcast %cst_25 : f32 to vector<2x8x1xf32>
    %83 = arith.mulf %81, %82 : vector<2x8x1xf32>
    %84 = vector.broadcast %83 : vector<2x8x1xf32> to vector<2x8x128xf32>
    %85 = arith.subf %79, %84 : vector<2x8x128xf32>
    %86 = vector.broadcast %17 : vector<1x1x128xf32> to vector<2x8x128xf32>
    %87 = arith.mulf %85, %86 : vector<2x8x128xf32>
    %88 = arith.mulf %87, %87 : vector<2x8x128xf32>
    %cst_26 = arith.constant dense<0.000000e+00> : vector<2x8xf32>
    %89 = vector.multi_reduction <add>, %88, %cst_26 [2] : vector<2x8x128xf32> to vector<2x8xf32>
    %90 = vector.shape_cast %89 : vector<2x8xf32> to vector<2x8x1xf32>
    %cst_27 = arith.constant 0.0238095243 : f32
    %91 = vector.broadcast %cst_27 : f32 to vector<2x8x1xf32>
    %92 = arith.mulf %90, %91 : vector<2x8x1xf32>
    %cst_28 = arith.constant 9.99999974E-6 : f32
    %93 = vector.broadcast %cst_28 : f32 to vector<2x8x1xf32>
    %94 = arith.addf %92, %93 : vector<2x8x1xf32>
    %95 = math.rsqrt %94 : vector<2x8x1xf32>
    %96 = vector.broadcast %95 : vector<2x8x1xf32> to vector<2x8x128xf32>
    %97 = arith.mulf %87, %96 : vector<2x8x128xf32>
    %98 = vector.shape_cast %6 : vector<128xf32> to vector<1x1x128xf32>
    %99 = vector.broadcast %98 : vector<1x1x128xf32> to vector<2x8x128xf32>
    %100 = arith.mulf %97, %99 : vector<2x8x128xf32>
    %101 = vector.shape_cast %8 : vector<128xf32> to vector<1x1x128xf32>
    %102 = vector.broadcast %101 : vector<1x1x128xf32> to vector<2x8x128xf32>
    %103 = arith.addf %100, %102 : vector<2x8x128xf32>
    %104 = vector.shape_cast %103 : vector<2x8x128xf32> to vector<16x128xf32>
    %105 = vector.extract_strided_slice %18 {offsets = [0, 384], sizes = [128, 256], strides = [1, 1]} : vector<128x640xf32> to vector<128x256xf32>
    %cst_29 = arith.constant dense<0.000000e+00> : vector<16x256xf32>
    %106 = tpu.matmul %104, %105, %cst_29 {dimension_numbers = #tpu.dot_dimension_numbers<[1], [0], [0], [1], [0, 0, 1, 1], [], []>} : vector<16x128xf32>, vector<128x256xf32>, vector<16x256xf32> -> vector<16x256xf32>
    %c0_30 = arith.constant 0 : index
    %c0_31 = arith.constant 0 : index
    %107 = vector.load %arg3[%c0_30, %c0_31] : memref<1x256xf32, #tpu.memory_space<vmem>>, vector<1x256xf32>
    %108 = vector.shape_cast %107 : vector<1x256xf32> to vector<256xf32>
    %109 = vector.shape_cast %108 : vector<256xf32> to vector<1x256xf32>
    %110 = vector.broadcast %109 : vector<1x256xf32> to vector<16x256xf32>
    %111 = arith.addf %106, %110 : vector<16x256xf32>
    %cst_32 = arith.constant 5.000000e-01 : f32
    %112 = vector.broadcast %cst_32 : f32 to vector<16x256xf32>
    %113 = arith.mulf %112, %111 : vector<16x256xf32>
    %cst_33 = arith.constant 4.471500e-02 : f32
    %114 = vector.broadcast %cst_33 : f32 to vector<16x256xf32>
    %115 = arith.mulf %114, %111 : vector<16x256xf32>
    %116 = arith.mulf %115, %111 : vector<16x256xf32>
    %117 = arith.mulf %116, %111 : vector<16x256xf32>
    %118 = arith.addf %111, %117 : vector<16x256xf32>
    %cst_34 = arith.constant 0.797884583 : f32
    %119 = vector.broadcast %cst_34 : f32 to vector<16x256xf32>
    %120 = arith.mulf %119, %118 : vector<16x256xf32>
    %121 = math.tanh %120 : vector<16x256xf32>
    %cst_35 = arith.constant 1.000000e+00 : f32
    %122 = vector.broadcast %cst_35 : f32 to vector<16x256xf32>
    %123 = arith.addf %122, %121 : vector<16x256xf32>
    %124 = arith.mulf %113, %123 : vector<16x256xf32>
    %125 = vector.extract_strided_slice %19 {offsets = [128, 0], sizes = [256, 128], strides = [1, 1]} : vector<384x128xf32> to vector<256x128xf32>
    %cst_36 = arith.constant dense<0.000000e+00> : vector<16x128xf32>
    %126 = tpu.matmul %124, %125, %cst_36 {dimension_numbers = #tpu.dot_dimension_numbers<[1], [0], [0], [1], [0, 0, 1, 1], [], []>} : vector<16x256xf32>, vector<256x128xf32>, vector<16x128xf32> -> vector<16x128xf32>
    %127 = vector.shape_cast %126 : vector<16x128xf32> to vector<2x8x128xf32>
    %128 = vector.shape_cast %12 : vector<128xf32> to vector<1x1x128xf32>
    %129 = vector.broadcast %128 : vector<1x1x128xf32> to vector<2x8x128xf32>
    %130 = arith.addf %127, %129 : vector<2x8x128xf32>
    %131 = arith.addf %79, %130 : vector<2x8x128xf32>
    %c0_37 = arith.constant 0 : index
    %c0_38 = arith.constant 0 : index
    %c0_39 = arith.constant 0 : index
    %132 = vector.load %arg6[%c0_37, %c0_38, %c0_39] : memref<2x8x128xf32, #tpu.memory_space<vmem>>, vector<2x8x128xf32>
    tpu.vector_store %arg6[%c0_37, %c0_38, %c0_39], %131 {strides = array<i32>} : memref<2x8x128xf32, #tpu.memory_space<vmem>>, vector<2x8x128xf32>,
    return
  }
  func.func @transform_0(%arg0: i32) -> (i32, i32, i32) {
    %c0_i32 = arith.constant 0 : i32
    %c0_i32_0 = arith.constant 0 : i32
    %c0_i32_1 = arith.constant 0 : i32
    return %arg0, %c0_i32, %c0_i32_0 : i32, i32, i32
  }
  func.func @transform_1(%arg0: i32) -> (i32, i32) {
    %c0_i32 = arith.constant 0 : i32
    %c0_i32_0 = arith.constant 0 : i32
    %c0_i32_1 = arith.constant 0 : i32
    return %c0_i32, %c0_i32_0 : i32, i32
  }
  func.func @transform_2(%arg0: i32) -> (i32, i32) {
    %c0_i32 = arith.constant 0 : i32
    %c0_i32_0 = arith.constant 0 : i32
    %c0_i32_1 = arith.constant 0 : i32
    return %c0_i32, %c0_i32_0 : i32, i32
  }
  func.func @transform_3(%arg0: i32) -> (i32, i32) {
    %c0_i32 = arith.constant 0 : i32
    %c0_i32_0 = arith.constant 0 : i32
    %c0_i32_1 = arith.constant 0 : i32
    return %c0_i32, %c0_i32_0 : i32, i32
  }
  func.func @transform_4(%arg0: i32) -> (i32, i32) {
    %c0_i32 = arith.constant 0 : i32
    %c0_i32_0 = arith.constant 0 : i32
    %c0_i32_1 = arith.constant 0 : i32
    return %c0_i32, %c0_i32_0 : i32, i32
  }
  func.func @transform_5(%arg0: i32) -> (i32, i32, i32) {
    %c0_i32 = arith.constant 0 : i32
    %c0_i32_0 = arith.constant 0 : i32
    %c0_i32_1 = arith.constant 0 : i32
    return %arg0, %c0_i32, %c0_i32_0 : i32, i32, i32
  }
}

</mosaic_0001>

<llo_original>
// kernel: _forward.1
$region0: #{_forward.1}
  #allocation0 [shape = 'u32[]', space=smem, size = 0x4, offset = 0x4, fixed_abs, tag = 'smem constant byte address 0x4 - core index']
  #allocation1 [shape = 'u32[144,128]{1,0:T(1,128)}', space=vmem, size = 0x12000, scoped, tag = 'internal scratch']
  %s0 = inlined_call_operand.vmem [shape: f32[2,8,128], index: 0, kind: input, shape index: {}]
  %s1 = inlined_call_operand.vmem [shape: f32[6,128], index: 1, kind: input, shape index: {}]
  %s2 = inlined_call_operand.vmem [shape: f32[1,256], index: 2, kind: input, shape index: {}]
  %s3 = inlined_call_operand.hbm [shape: f32[128,640], index: 3, kind: input, shape index: {}]
  %s4 = inlined_call_operand.hbm [shape: f32[384,128], index: 4, kind: input, shape index: {}]
  %s5 = inlined_call_operand.hbm [shape: f32[2,8,128], index: 5, kind: output, shape index: {}]
  %s6 = sld [smem:[#allocation0]]
  $region38: #{_forward.1} parent=0
    _
  %s8 = ssub.s32 1, %s6
  %s9 = scalar_select 0, %s8, %s6
  $region1: #{_forward.1} parent=0
    #allocation2 [shape = 'u8[327680]{0}', space=vmem, size = 0x50000, scoped, tag = 'input window, operand 3, single buffered']
    #allocation3 [shape = 's32[1]{0}', space=sflag, size = 0x4, scoped, tag = 'scoped memory for _forward.1']
    #allocation4 [shape = 's32[1]{0}', space=sflag, size = 0x4, scoped, tag = 'scoped memory for _forward.1']
    #allocation5 [shape = 'u8[196608]{0}', space=vmem, size = 0x30000, scoped, tag = 'input window, operand 4, single buffered']
    #allocation6 [shape = 's32[1]{0}', space=sflag, size = 0x4, scoped, tag = 'scoped memory for _forward.1']
    #allocation7 [shape = 'u8[8192]{0}', space=vmem, size = 0x2000, scoped, tag = 'output window, operand 0, single buffered']
    %10 = vsyncpa [#allocation3], 0
    %11 = vsyncpa [#allocation6], 0
    %12 = vsyncpa [#allocation4], 0
    // Predicated region
    $region2: #{_forward.1} parent=1 // pred_check
      _
    $region3: #{_forward.1} parent=1 // pred_check_branch
      %14 = sbr.rel (0) target = $region5
    $region4: #{_forward.1} parent=1 // pred_region
      _
    $region5: #{_forward.1} parent=1 // pred_fallthru
      _
    // Predicated region
    $region6: #{_forward.1} parent=1 // pred_check
      _
    $region7: #{_forward.1} parent=1 // pred_check_branch
      %16 = sbr.rel (0) target = $region9
    $region8: #{_forward.1} parent=1 // pred_region
      _
    $region9: #{_forward.1} parent=1 // pred_fallthru
      _
    // Predicated region
    $region10: #{_forward.1} parent=1 // pred_check
      _
    $region11: #{_forward.1} parent=1 // pred_check_branch
      %18 = sbr.rel (0) target = $region13
    $region12: #{_forward.1} parent=1 // pred_region
      _
    $region13: #{_forward.1} parent=1 // pred_fallthru
      _
    // Predicated region
    $region14: #{_forward.1} parent=1 // pred_check
      _
    $region15: #{_forward.1} parent=1 // pred_check_branch
      %20 = sbr.rel (0) target = $region17
    $region16: #{_forward.1} parent=1 // pred_region
      %s22 = ssub.s32 10240, 10240
      %23 = vsyncadd [#allocation3], %s22
      %s24 = sshll.u32 [#allocation2], 4
      %s25 = int_to_ptr.vmem [resolvable:$true] %s24
      %30 = dma.hbm_to_vmem [thread:$0]  %s3, 10240, %s25, [#allocation3], 640, 640, 40
    $region17: #{_forward.1} parent=1 // pred_fallthru
      _
    // Predicated region
    $region18: #{_forward.1} parent=1 // pred_check
      _
    $region19: #{_forward.1} parent=1 // pred_check_branch
      %32 = sbr.rel (0) target = $region21
    $region20: #{_forward.1} parent=1 // pred_region
      %s34 = ssub.s32 6144, 6144
      %35 = vsyncadd [#allocation6], %s34
      %s36 = sshll.u32 [#allocation5], 4
      %s37 = int_to_ptr.vmem [resolvable:$true] %s36
      %42 = dma.hbm_to_vmem [thread:$0]  %s4, 6144, %s37, [#allocation6], 128, 128, 8
    $region21: #{_forward.1} parent=1 // pred_fallthru
      _
    // Predicated region
    $region22: #{_forward.1} parent=1 // pred_check
      _
    $region23: #{_forward.1} parent=1 // pred_check_branch
      %44 = sbr.rel (0) target = $region25
    $region24: #{_forward.1} parent=1 // pred_region
      %45 = dma.done [#allocation3], 10240
    $region25: #{_forward.1} parent=1 // pred_fallthru
      _
    // Predicated region
    $region26: #{_forward.1} parent=1 // pred_check
      _
    $region27: #{_forward.1} parent=1 // pred_check_branch
      %47 = sbr.rel (0) target = $region29
    $region28: #{_forward.1} parent=1 // pred_region
      %48 = dma.done [#allocation6], 6144
    $region29: #{_forward.1} parent=1 // pred_fallthru
      _
    %v49 = vld [vmem:[%s0] sm:$0xff]
    %v50 = vld [vmem:[%s0 + $0x8] sm:$0xff]
    %v51 = vld [vmem:[%s1] sm:$0x1]
    %v52 = vld [vmem:[%s1 + $0x1] sm:$0x1]
    %v53 = vld [vmem:[%s1 + $0x2] sm:$0x1]
    %v54 = vld [vmem:[%s1 + $0x3] sm:$0x1]
    %v55 = vld [vmem:[%s1 + $0x4] sm:$0x1]
    %v56 = vld [vmem:[%s1 + $0x5] sm:$0x1]
    %v57 = vlaneseq
    %v58 = vand.u32 %v57, 127
    %vm59 = vcmp.lt.s32.totalorder %v58, 42
    %v60 = vsel %vm59, 1, 0
    %v61 = vcvt.s32.f32 %v60
    %v62 = vld [vmem:[#allocation2] sm:$0xff]
    %v63 = vld [vmem:[#allocation2 + $0x8] sm:$0xff]
    %v64 = vld [vmem:[#allocation2 + $0x10] sm:$0xff]
    %v65 = vld [vmem:[#allocation2 + $0x18] sm:$0xff]
    %v66 = vld [vmem:[#allocation2 + $0x20] sm:$0xff]
    %v67 = vld [vmem:[#allocation2 + $0x28] sm:$0xff]
    %v68 = vld [vmem:[#allocation2 + $0x30] sm:$0xff]
    %v69 = vld [vmem:[#allocation2 + $0x38] sm:$0xff]
    %v70 = vld [vmem:[#allocation2 + $0x40] sm:$0xff]
    %v71 = vld [vmem:[#allocation2 + $0x48] sm:$0xff]
    %v72 = vld [vmem:[#allocation2 + $0x50] sm:$0xff]
    %v73 = vld [vmem:[#allocation2 + $0x58] sm:$0xff]
    %v74 = vld [vmem:[#allocation2 + $0x60] sm:$0xff]
    %v75 = vld [vmem:[#allocation2 + $0x68] sm:$0xff]
    %v76 = vld [vmem:[#allocation2 + $0x70] sm:$0xff]
    %v77 = vld [vmem:[#allocation2 + $0x78] sm:$0xff]
    %v78 = vld [vmem:[#allocation2 + $0x80] sm:$0xff]
    %v79 = vld [vmem:[#allocation2 + $0x88] sm:$0xff]
    %v80 = vld [vmem:[#allocation2 + $0x90] sm:$0xff]
    %v81 = vld [vmem:[#allocation2 + $0x98] sm:$0xff]
    %v82 = vld [vmem:[#allocation2 + $0xa0] sm:$0xff]
    %v83 = vld [vmem:[#allocation2 + $0xa8] sm:$0xff]
    %v84 = vld [vmem:[#allocation2 + $0xb0] sm:$0xff]
    %v85 = vld [vmem:[#allocation2 + $0xb8] sm:$0xff]
    %v86 = vld [vmem:[#allocation2 + $0xc0] sm:$0xff]
    %v87 = vld [vmem:[#allocation2 + $0xc8] sm:$0xff]
    %v88 = vld [vmem:[#allocation2 + $0xd0] sm:$0xff]
    %v89 = vld [vmem:[#allocation2 + $0xd8] sm:$0xff]
    %v90 = vld [vmem:[#allocation2 + $0xe0] sm:$0xff]
    %v91 = vld [vmem:[#allocation2 + $0xe8] sm:$0xff]
    %v92 = vld [vmem:[#allocation2 + $0xf0] sm:$0xff]
    %v93 = vld [vmem:[#allocation2 + $0xf8] sm:$0xff]
    %v94 = vld [vmem:[#allocation2 + $0x100] sm:$0xff]
    %v95 = vld [vmem:[#allocation2 + $0x108] sm:$0xff]
    %v96 = vld [vmem:[#allocation2 + $0x110] sm:$0xff]
    %v97 = vld [vmem:[#allocation2 + $0x118] sm:$0xff]
    %v98 = vld [vmem:[#allocation2 + $0x120] sm:$0xff]
    %v99 = vld [vmem:[#allocation2 + $0x128] sm:$0xff]
    %v100 = vld [vmem:[#allocation2 + $0x130] sm:$0xff]
    %v101 = vld [vmem:[#allocation2 + $0x138] sm:$0xff]
    %v102 = vld [vmem:[#allocation2 + $0x140] sm:$0xff]
    %v103 = vld [vmem:[#allocation2 + $0x148] sm:$0xff]
    %v104 = vld [vmem:[#allocation2 + $0x150] sm:$0xff]
    %v105 = vld [vmem:[#allocation2 + $0x158] sm:$0xff]
    %v106 = vld [vmem:[#allocation2 + $0x160] sm:$0xff]
    %v107 = vld [vmem:[#allocation2 + $0x168] sm:$0xff]
    %v108 = vld [vmem:[#allocation2 + $0x170] sm:$0xff]
    %v109 = vld [vmem:[#allocation2 + $0x178] sm:$0xff]
    %v110 = vld [vmem:[#allocation2 + $0x180] sm:$0xff]
    %v111 = vld [vmem:[#allocation2 + $0x188] sm:$0xff]
    %v112 = vld [vmem:[#allocation2 + $0x190] sm:$0xff]
    %v113 = vld [vmem:[#allocation2 + $0x198] sm:$0xff]
    %v114 = vld [vmem:[#allocation2 + $0x1a0] sm:$0xff]
    %v115 = vld [vmem:[#allocation2 + $0x1a8] sm:$0xff]
    %v116 = vld [vmem:[#allocation2 + $0x1b0] sm:$0xff]
    %v117 = vld [vmem:[#allocation2 + $0x1b8] sm:$0xff]
    %v118 = vld [vmem:[#allocation2 + $0x1c0] sm:$0xff]
    %v119 = vld [vmem:[#allocation2 + $0x1c8] sm:$0xff]
    %v120 = vld [vmem:[#allocation2 + $0x1d0] sm:$0xff]
    %v121 = vld [vmem:[#allocation2 + $0x1d8] sm:$0xff]
    %v122 = vld [vmem:[#allocation2 + $0x1e0] sm:$0xff]
    %v123 = vld [vmem:[#allocation2 + $0x1e8] sm:$0xff]
    %v124 = vld [vmem:[#allocation2 + $0x1f0] sm:$0xff]
    %v125 = vld [vmem:[#allocation2 + $0x1f8] sm:$0xff]
    %v126 = vld [vmem:[#allocation2 + $0x200] sm:$0xff]
    %v127 = vld [vmem:[#allocation2 + $0x208] sm:$0xff]
    %v128 = vld [vmem:[#allocation2 + $0x210] sm:$0xff]
    %v129 = vld [vmem:[#allocation2 + $0x218] sm:$0xff]
    %v130 = vld [vmem:[#allocation2 + $0x220] sm:$0xff]
    %v131 = vld [vmem:[#allocation2 + $0x228] sm:$0xff]
    %v132 = vld [vmem:[#allocation2 + $0x230] sm:$0xff]
    %v133 = vld [vmem:[#allocation2 + $0x238] sm:$0xff]
    %v134 = vld [vmem:[#allocation2 + $0x240] sm:$0xff]
    %v135 = vld [vmem:[#allocation2 + $0x248] sm:$0xff]
    %v136 = vld [vmem:[#allocation2 + $0x250] sm:$0xff]
    %v137 = vld [vmem:[#allocation2 + $0x258] sm:$0xff]
    %v138 = vld [vmem:[#allocation2 + $0x260] sm:$0xff]
    %v139 = vld [vmem:[#allocation2 + $0x268] sm:$0xff]
    %v140 = vld [vmem:[#allocation2 + $0x270] sm:$0xff]
    %v141 = vld [vmem:[#allocation2 + $0x278] sm:$0xff]
    %v142 = vld [vmem:[#allocation5] sm:$0xff]
    %v143 = vld [vmem:[#allocation5 + $0x8] sm:$0xff]
    %v144 = vld [vmem:[#allocation5 + $0x10] sm:$0xff]
    %v145 = vld [vmem:[#allocation5 + $0x18] sm:$0xff]
    %v146 = vld [vmem:[#allocation5 + $0x20] sm:$0xff]
    %v147 = vld [vmem:[#allocation5 + $0x28] sm:$0xff]
    %v148 = vld [vmem:[#allocation5 + $0x30] sm:$0xff]
    %v149 = vld [vmem:[#allocation5 + $0x38] sm:$0xff]
    %v150 = vld [vmem:[#allocation5 + $0x40] sm:$0xff]
    %v151 = vld [vmem:[#allocation5 + $0x48] sm:$0xff]
    %v152 = vld [vmem:[#allocation5 + $0x50] sm:$0xff]
    %v153 = vld [vmem:[#allocation5 + $0x58] sm:$0xff]
    %v154 = vld [vmem:[#allocation5 + $0x60] sm:$0xff]
    %v155 = vld [vmem:[#allocation5 + $0x68] sm:$0xff]
    %v156 = vld [vmem:[#allocation5 + $0x70] sm:$0xff]
    %v157 = vld [vmem:[#allocation5 + $0x78] sm:$0xff]
    %v158 = vld [vmem:[#allocation5 + $0x80] sm:$0xff]
    %v159 = vld [vmem:[#allocation5 + $0x88] sm:$0xff]
    %v160 = vld [vmem:[#allocation5 + $0x90] sm:$0xff]
    %v161 = vld [vmem:[#allocation5 + $0x98] sm:$0xff]
    %v162 = vld [vmem:[#allocation5 + $0xa0] sm:$0xff]
    %v163 = vld [vmem:[#allocation5 + $0xa8] sm:$0xff]
    %v164 = vld [vmem:[#allocation5 + $0xb0] sm:$0xff]
    %v165 = vld [vmem:[#allocation5 + $0xb8] sm:$0xff]
    %v166 = vld [vmem:[#allocation5 + $0xc0] sm:$0xff]
    %v167 = vld [vmem:[#allocation5 + $0xc8] sm:$0xff]
    %v168 = vld [vmem:[#allocation5 + $0xd0] sm:$0xff]
    %v169 = vld [vmem:[#allocation5 + $0xd8] sm:$0xff]
    %v170 = vld [vmem:[#allocation5 + $0xe0] sm:$0xff]
    %v171 = vld [vmem:[#allocation5 + $0xe8] sm:$0xff]
    %v172 = vld [vmem:[#allocation5 + $0xf0] sm:$0xff]
    %v173 = vld [vmem:[#allocation5 + $0xf8] sm:$0xff]
    %v174 = vld [vmem:[#allocation5 + $0x100] sm:$0xff]
    %v175 = vld [vmem:[#allocation5 + $0x108] sm:$0xff]
    %v176 = vld [vmem:[#allocation5 + $0x110] sm:$0xff]
    %v177 = vld [vmem:[#allocation5 + $0x118] sm:$0xff]
    %v178 = vld [vmem:[#allocation5 + $0x120] sm:$0xff]
    %v179 = vld [vmem:[#allocation5 + $0x128] sm:$0xff]
    %v180 = vld [vmem:[#allocation5 + $0x130] sm:$0xff]
    %v181 = vld [vmem:[#allocation5 + $0x138] sm:$0xff]
    %v182 = vld [vmem:[#allocation5 + $0x140] sm:$0xff]
    %v183 = vld [vmem:[#allocation5 + $0x148] sm:$0xff]
    %v184 = vld [vmem:[#allocation5 + $0x150] sm:$0xff]
    %v185 = vld [vmem:[#allocation5 + $0x158] sm:$0xff]
    %v186 = vld [vmem:[#allocation5 + $0x160] sm:$0xff]
    %v187 = vld [vmem:[#allocation5 + $0x168] sm:$0xff]
    %v188 = vld [vmem:[#allocation5 + $0x170] sm:$0xff]
    %v189 = vld [vmem:[#allocation5 + $0x178] sm:$0xff]
    %190 = vadd.xlane.f32.xlu0 %v49
    %v191 = vpop.xlane.xlu0 %190
    %192 = vadd.xlane.f32.xlu0 %v50
    %v193 = vpop.xlane.xlu0 %192
    %v194 = vmul.f32 %v191, 0.023809524
    %v195 = vmul.f32 %v193, 0.023809524
    %v196 = vsub.f32 %v49, %v194
    %v197 = vsub.f32 %v50, %v195
    %v198 = vmul.f32 %v196, %v61
    %v199 = vmul.f32 %v197, %v61
    %v200 = vmul.f32 %v198, %v198
    %v201 = vmul.f32 %v199, %v199
    %202 = vadd.xlane.f32.xlu0 %v200
    %v203 = vpop.xlane.xlu0 %202
    %204 = vadd.xlane.f32.xlu0 %v201
    %v205 = vpop.xlane.xlu0 %204
    %v206 = vmul.f32 %v203, 0.023809524
    %v207 = vmul.f32 %v205, 0.023809524
    %v208 = vadd.f32 %v206, 1e-05
    %v209 = vadd.f32 %v207, 1e-05
    %v210 = vrsqrt.pop %v208
    %v211 = vrsqrt.pop %v209
    %v212 = vmul.f32 %v198, %v210
    %v213 = vmul.f32 %v199, %v211
    %v214 = vlaneseq
    %v215 = vshrl.u32 %v214, 7
    %v216 = vsub.s32 0, %v215
    %v217 = vrot.slane %v51, %v216
    %v218 = vmul.f32 %v212, %v217
    %v219 = vmul.f32 %v213, %v217
    %v220 = vlaneseq
    %v221 = vshrl.u32 %v220, 7
    %v222 = vsub.s32 0, %v221
    %v223 = vrot.slane %v52, %v222
    %v224 = vadd.f32 %v218, %v223
    %v225 = vadd.f32 %v219, %v223
    %226 = vmatprep.subr.mxu0 %v63
    %227 = vmatpush1.msra.mxu0 %v62
    %228 = vmatprep.subr.mxu0 %v68
    %229 = vmatpush1.msra.mxu0 %v67
    %230 = vmatprep.subr.mxu0 %v73
    %231 = vmatpush1.msra.mxu0 %v72
    %232 = vmatprep.subr.mxu0 %v78
    %233 = vmatpush1.msra.mxu0 %v77
    %234 = vmatprep.subr.mxu0 %v83
    %235 = vmatpush1.msra.mxu0 %v82
    %236 = vmatprep.subr.mxu0 %v88
    %237 = vmatpush1.msra.mxu0 %v87
    %238 = vmatprep.subr.mxu0 %v93
    %239 = vmatpush1.msra.mxu0 %v92
    %240 = vmatprep.subr.mxu0 %v98
    %241 = vmatpush1.msra.mxu0 %v97
    %242 = vmatprep.subr.mxu0 %v103
    %243 = vmatpush1.msra.mxu0 %v102
    %244 = vmatprep.subr.mxu0 %v108
    %245 = vmatpush1.msra.mxu0 %v107
    %246 = vmatprep.subr.mxu0 %v113
    %247 = vmatpush1.msra.mxu0 %v112
    %248 = vmatprep.subr.mxu0 %v118
    %249 = vmatpush1.msra.mxu0 %v117
    %250 = vmatprep.subr.mxu0 %v123
    %251 = vmatpush1.msra.mxu0 %v122
    %252 = vmatprep.subr.mxu0 %v128
    %253 = vmatpush1.msra.mxu0 %v127
    %254 = vmatprep.subr.mxu0 %v133
    %255 = vmatpush1.msra.mxu0 %v132
    %256 = vmatprep.subr.mxu0 %v138
    %257 = vmatpush1.msra.mxu0 %v137
    %258 = vmatprep.subr.mxu0 0.0
    %259 = vmatpush1.msra.mxu0 0.0
    %260 = vmatprep.subr.mxu0 0.0
    %261 = vmatpush1.msra.mxu0 0.0
    %262 = vmatprep.subr.mxu0 0.0
    %263 = vmatpush1.msra.mxu0 0.0
    %264 = vmatprep.subr.mxu0 0.0
    %265 = vmatpush1.msra.mxu0 0.0
    %266 = vmatprep.subr.mxu0 0.0
    %267 = vmatpush1.msra.mxu0 0.0
    %268 = vmatprep.subr.mxu0 0.0
    %269 = vmatpush1.msra.mxu0 0.0
    %270 = vmatprep.subr.mxu0 0.0
    %271 = vmatpush1.msra.mxu0 0.0
    %272 = vmatprep.subr.mxu0 0.0
    %273 = vmatpush1.msra.mxu0 0.0
    %274 = vmatprep.subr.mxu0 0.0
    %275 = vmatpush1.msra.mxu0 0.0
    %276 = vmatprep.subr.mxu0 0.0
    %277 = vmatpush1.msra.mxu0 0.0
    %278 = vmatprep.subr.mxu0 0.0
    %279 = vmatpush1.msra.mxu0 0.0
    %280 = vmatprep.subr.mxu0 0.0
    %281 = vmatpush1.msra.mxu0 0.0
    %282 = vmatprep.subr.mxu0 0.0
    %283 = vmatpush1.msra.mxu0 0.0
    %284 = vmatprep.subr.mxu0 0.0
    %285 = vmatpush1.msra.mxu0 0.0
    %286 = vmatprep.subr.mxu0 0.0
    %287 = vmatpush1.msra.mxu0 0.0
    %288 = vmatprep.subr.mxu0 0.0
    %289 = vmatpush1.msra.mxu0 0.0
    %290 = vmatprep.mubr.f32.mxu0 0.0
    %291 = vmatmul.mubr.f32.gmra.mrb[0].mxu0 %v224
    %v292 = vpop.f32.mrb[0].mxu0
    %v293 = vadd.f32 0.0, %v292
    %v294 = vpop.f32.mrb[0].mxu0
    %v295 = vadd.f32 0.0, %v294
    %296 = vmatprep.mubr.f32.mxu0 0.0
    %297 = vmatmul.mubr.f32.gmra.mrb[0].mxu0 %v225
    %v298 = vpop.f32.mrb[0].mxu0
    %v299 = vadd.f32 0.0, %v298
    %v300 = vpop.f32.mrb[0].mxu0
    %v301 = vadd.f32 0.0, %v300
    %302 = vdwg.mxu0
    %303 = vmatprep.subr.mxu0 0.0
    %304 = vmatpush1.msra.mxu0 %v64
    %305 = vmatprep.subr.mxu0 0.0
    %306 = vmatpush1.msra.mxu0 %v69
    %307 = vmatprep.subr.mxu0 0.0
    %308 = vmatpush1.msra.mxu0 %v74
    %309 = vmatprep.subr.mxu0 0.0
    %310 = vmatpush1.msra.mxu0 %v79
    %311 = vmatprep.subr.mxu0 0.0
    %312 = vmatpush1.msra.mxu0 %v84
    %313 = vmatprep.subr.mxu0 0.0
    %314 = vmatpush1.msra.mxu0 %v89
    %315 = vmatprep.subr.mxu0 0.0
    %316 = vmatpush1.msra.mxu0 %v94
    %317 = vmatprep.subr.mxu0 0.0
    %318 = vmatpush1.msra.mxu0 %v99
    %319 = vmatprep.subr.mxu0 0.0
    %320 = vmatpush1.msra.mxu0 %v104
    %321 = vmatprep.subr.mxu0 0.0
    %322 = vmatpush1.msra.mxu0 %v109
    %323 = vmatprep.subr.mxu0 0.0
    %324 = vmatpush1.msra.mxu0 %v114
    %325 = vmatprep.subr.mxu0 0.0
    %326 = vmatpush1.msra.mxu0 %v119
    %327 = vmatprep.subr.mxu0 0.0
    %328 = vmatpush1.msra.mxu0 %v124
    %329 = vmatprep.subr.mxu0 0.0
    %330 = vmatpush1.msra.mxu0 %v129
    %331 = vmatprep.subr.mxu0 0.0
    %332 = vmatpush1.msra.mxu0 %v134
    %333 = vmatprep.subr.mxu0 0.0
    %334 = vmatpush1.msra.mxu0 %v139
    %335 = vmatprep.subr.mxu0 0.0
    %336 = vmatpush1.msra.mxu0 0.0
    %337 = vmatprep.subr.mxu0 0.0
    %338 = vmatpush1.msra.mxu0 0.0
    %339 = vmatprep.subr.mxu0 0.0
    %340 = vmatpush1.msra.mxu0 0.0
    %341 = vmatprep.subr.mxu0 0.0
    %342 = vmatpush1.msra.mxu0 0.0
    %343 = vmatprep.subr.mxu0 0.0
    %344 = vmatpush1.msra.mxu0 0.0
    %345 = vmatprep.subr.mxu0 0.0
    %346 = vmatpush1.msra.mxu0 0.0
    %347 = vmatprep.subr.mxu0 0.0
    %348 = vmatpush1.msra.mxu0 0.0
    %349 = vmatprep.subr.mxu0 0.0
    %350 = vmatpush1.msra.mxu0 0.0
    %351 = vmatprep.subr.mxu0 0.0
    %352 = vmatpush1.msra.mxu0 0.0
    %353 = vmatprep.subr.mxu0 0.0
    %354 = vmatpush1.msra.mxu0 0.0
    %355 = vmatprep.subr.mxu0 0.0
    %356 = vmatpush1.msra.mxu0 0.0
    %357 = vmatprep.subr.mxu0 0.0
    %358 = vmatpush1.msra.mxu0 0.0
    %359 = vmatprep.subr.mxu0 0.0
    %360 = vmatpush1.msra.mxu0 0.0
    %361 = vmatprep.subr.mxu0 0.0
    %362 = vmatpush1.msra.mxu0 0.0
    %363 = vmatprep.subr.mxu0 0.0
    %364 = vmatpush1.msra.mxu0 0.0
    %365 = vmatprep.subr.mxu0 0.0
    %366 = vmatpush1.msra.mxu0 0.0
    %367 = vmatprep.mubr.f32.mxu0 0.0
    %368 = vmatmul.mubr.f32.gmra.mrb[0].mxu0 %v224
    %v369 = vpop.f32.mrb[0].mxu0
    %v370 = vadd.f32 0.0, %v369
    %v371 = vpop.f32.mrb[0].mxu0
    %372 = vmatprep.mubr.f32.mxu0 0.0
    %373 = vmatmul.mubr.f32.gmra.mrb[0].mxu0 %v225
    %v374 = vpop.f32.mrb[0].mxu0
    %v375 = vadd.f32 0.0, %v374
    %v376 = vpop.f32.mrb[0].mxu0
    %377 = vdwg.mxu0
    %378 = vmatprep.subr.mxu0 0.0
    %379 = vmatpush1.xpose.msra.mxu0 %v295
    %380 = vmatprep.subr.mxu0 0.0
    %381 = vmatpush1.xpose.msra.mxu0 0.0
    %382 = vmatprep.subr.mxu0 0.0
    %383 = vmatpush1.xpose.msra.mxu0 0.0
    %384 = vmatprep.subr.mxu0 0.0
    %385 = vmatpush1.xpose.msra.mxu0 0.0
    %386 = vmatprep.subr.mxu0 0.0
    %387 = vmatpush1.xpose.msra.mxu0 0.0
    %388 = vmatprep.subr.mxu0 0.0
    %389 = vmatpush1.xpose.msra.mxu0 0.0
    %390 = vmatprep.subr.mxu0 0.0
    %391 = vmatpush1.xpose.msra.mxu0 0.0
    %392 = vmatprep.subr.mxu0 0.0
    %393 = vmatpush1.xpose.msra.mxu0 0.0
    %394 = vmatprep.subr.mxu0 0.0
    %395 = vmatpush1.xpose.msra.mxu0 0.0
    %396 = vmatprep.subr.mxu0 0.0
    %397 = vmatpush1.xpose.msra.mxu0 0.0
    %398 = vmatprep.subr.mxu0 0.0
    %399 = vmatpush1.xpose.msra.mxu0 0.0
    %400 = vmatprep.subr.mxu0 0.0
    %401 = vmatpush1.xpose.msra.mxu0 0.0
    %402 = vmatprep.subr.mxu0 0.0
    %403 = vmatpush1.xpose.msra.mxu0 0.0
    %404 = vmatprep.subr.mxu0 0.0
    %405 = vmatpush1.xpose.msra.mxu0 0.0
    %406 = vmatprep.subr.mxu0 0.0
    %407 = vmatpush1.xpose.msra.mxu0 0.0
    %408 = vmatprep.subr.mxu0 0.0
    %409 = vmatpush1.xpose.msra.mxu0 0.0
    %410 = vmatprep.subr.mxu0 0.0
    %411 = vmatpush1.xpose.msra.mxu0 0.0
    %412 = vmatprep.subr.mxu0 0.0
    %413 = vmatpush1.xpose.msra.mxu0 0.0
    %414 = vmatprep.subr.mxu0 0.0
    %415 = vmatpush1.xpose.msra.mxu0 0.0
    %416 = vmatprep.subr.mxu0 0.0
    %417 = vmatpush1.xpose.msra.mxu0 0.0
    %418 = vmatprep.subr.mxu0 0.0
    %419 = vmatpush1.xpose.msra.mxu0 0.0
    %420 = vmatprep.subr.mxu0 0.0
    %421 = vmatpush1.xpose.msra.mxu0 0.0
    %422 = vmatprep.subr.mxu0 0.0
    %423 = vmatpush1.xpose.msra.mxu0 0.0
    %424 = vmatprep.subr.mxu0 0.0
    %425 = vmatpush1.xpose.msra.mxu0 0.0
    %426 = vmatprep.subr.mxu0 0.0
    %427 = vmatpush1.xpose.msra.mxu0 0.0
    %428 = vmatprep.subr.mxu0 0.0
    %429 = vmatpush1.xpose.msra.mxu0 0.0
    %430 = vmatprep.subr.mxu0 0.0
    %431 = vmatpush1.xpose.msra.mxu0 0.0
    %432 = vmatprep.subr.mxu0 0.0
    %433 = vmatpush1.xpose.msra.mxu0 0.0
    %434 = vmatprep.subr.mxu0 0.0
    %435 = vmatpush1.xpose.msra.mxu0 0.0
    %436 = vmatprep.subr.mxu0 0.0
    %437 = vmatpush1.xpose.msra.mxu0 0.0
    %438 = vmatprep.subr.mxu0 0.0
    %439 = vmatpush1.xpose.msra.mxu0 0.0
    %440 = vmatprep.subr.mxu0 0.0
    %441 = vmatpush1.xpose.msra.mxu0 0.0
    %442 = vmatprep.mubr.f32.mxu0 0.0
    %443 = vmatmul.mubr.f32.gmra.mrb[0].mxu0 %v293
    %v444 = vpop.f32.mrb[0].mxu0
    %v445 = vadd.f32 0.0, %v444
    %v446 = vpop.f32.mrb[0].mxu0
    %447 = vdwg.mxu0
    %448 = vmatprep.subr.mxu0 0.0
    %449 = vmatpush1.xpose.msra.mxu0 %v301
    %450 = vmatprep.subr.mxu0 0.0
    %451 = vmatpush1.xpose.msra.mxu0 0.0
    %452 = vmatprep.subr.mxu0 0.0
    %453 = vmatpush1.xpose.msra.mxu0 0.0
    %454 = vmatprep.subr.mxu0 0.0
    %455 = vmatpush1.xpose.msra.mxu0 0.0
    %456 = vmatprep.subr.mxu0 0.0
    %457 = vmatpush1.xpose.msra.mxu0 0.0
    %458 = vmatprep.subr.mxu0 0.0
    %459 = vmatpush1.xpose.msra.mxu0 0.0
    %460 = vmatprep.subr.mxu0 0.0
    %461 = vmatpush1.xpose.msra.mxu0 0.0
    %462 = vmatprep.subr.mxu0 0.0
    %463 = vmatpush1.xpose.msra.mxu0 0.0
    %464 = vmatprep.subr.mxu0 0.0
    %465 = vmatpush1.xpose.msra.mxu0 0.0
    %466 = vmatprep.subr.mxu0 0.0
    %467 = vmatpush1.xpose.msra.mxu0 0.0
    %468 = vmatprep.subr.mxu0 0.0
    %469 = vmatpush1.xpose.msra.mxu0 0.0
    %470 = vmatprep.subr.mxu0 0.0
    %471 = vmatpush1.xpose.msra.mxu0 0.0
    %472 = vmatprep.subr.mxu0 0.0
    %473 = vmatpush1.xpose.msra.mxu0 0.0
    %474 = vmatprep.subr.mxu0 0.0
    %475 = vmatpush1.xpose.msra.mxu0 0.0
    %476 = vmatprep.subr.mxu0 0.0
    %477 = vmatpush1.xpose.msra.mxu0 0.0
    %478 = vmatprep.subr.mxu0 0.0
    %479 = vmatpush1.xpose.msra.mxu0 0.0
    %480 = vmatprep.subr.mxu0 0.0
    %481 = vmatpush1.xpose.msra.mxu0 0.0
    %482 = vmatprep.subr.mxu0 0.0
    %483 = vmatpush1.xpose.msra.mxu0 0.0
    %484 = vmatprep.subr.mxu0 0.0
    %485 = vmatpush1.xpose.msra.mxu0 0.0
    %486 = vmatprep.subr.mxu0 0.0
    %487 = vmatpush1.xpose.msra.mxu0 0.0
    %488 = vmatprep.subr.mxu0 0.0
    %489 = vmatpush1.xpose.msra.mxu0 0.0
    %490 = vmatprep.subr.mxu0 0.0
    %491 = vmatpush1.xpose.msra.mxu0 0.0
    %492 = vmatprep.subr.mxu0 0.0
    %493 = vmatpush1.xpose.msra.mxu0 0.0
    %494 = vmatprep.subr.mxu0 0.0
    %495 = vmatpush1.xpose.msra.mxu0 0.0
    %496 = vmatprep.subr.mxu0 0.0
    %497 = vmatpush1.xpose.msra.mxu0 0.0
    %498 = vmatprep.subr.mxu0 0.0
    %499 = vmatpush1.xpose.msra.mxu0 0.0
    %500 = vmatprep.subr.mxu0 0.0
    %501 = vmatpush1.xpose.msra.mxu0 0.0
    %502 = vmatprep.subr.mxu0 0.0
    %503 = vmatpush1.xpose.msra.mxu0 0.0
    %504 = vmatprep.subr.mxu0 0.0
    %505 = vmatpush1.xpose.msra.mxu0 0.0
    %506 = vmatprep.subr.mxu0 0.0
    %507 = vmatpush1.xpose.msra.mxu0 0.0
    %508 = vmatprep.subr.mxu0 0.0
    %509 = vmatpush1.xpose.msra.mxu0 0.0
    %510 = vmatprep.subr.mxu0 0.0
    %511 = vmatpush1.xpose.msra.mxu0 0.0
    %512 = vmatprep.mubr.f32.mxu0 0.0
    %513 = vmatmul.mubr.f32.gmra.mrb[0].mxu0 %v299
    %v514 = vpop.f32.mrb[0].mxu0
    %v515 = vadd.f32 0.0, %v514
    %v516 = vpop.f32.mrb[0].mxu0
    %517 = vdwg.mxu0
    %v518 = vlaneseq
    %v519 = vshrl.u32 %v518, 7
    %vm520 = vcmp.le.s32.totalorder %v58, %v519
    %v521 = vsel %vm520, 1, 0
    %vm522 = vcmp.eq.s32.totalorder %v521, 1
    %v523 = vsel %vm522, %v445, -1e+30
    %v524 = vsel %vm522, %v515, -1e+30
    %vm525 = vcmask 64512
    %v526 = vsel %vm525, %v523, -inf
    %527 = vmax.xlane.f32.xlu0 %v526
    %v528 = vpop.xlane.xlu0 %527
    %v529 = vsel %vm525, %v524, -inf
    %530 = vmax.xlane.f32.xlu0 %v529
    %v531 = vpop.xlane.xlu0 %530
    %v532 = vsub.f32 %v523, %v528
    %v533 = vsub.f32 %v524, %v531
    %v534 = vmul.f32 %v532, 1.442695
    %v535 = vpow.pop %v534
    %v536 = vmul.f32 %v533, 1.442695
    %v537 = vpow.pop %v536
    %v538 = vsel %vm525, %v535, 0.0
    %539 = vadd.xlane.f32.xlu0 %v538
    %v540 = vpop.xlane.xlu0 %539
    %v541 = vsel %vm525, %v537, 0.0
    %542 = vadd.xlane.f32.xlu0 %v541
    %v543 = vpop.xlane.xlu0 %542
    %v544 = vrcp.pop %v540
    %v545 = vmul.f32 %v535, %v544
    %v546 = vrcp.pop %v543
    %v547 = vmul.f32 %v537, %v546
    %v549 = vsel %vm525, %v545, 0
    %551 = vmatprep.subr.mxu0 0.0
    %552 = vmatpush1.msra.mxu0 %v370
    %553 = vmatprep.subr.mxu0 0.0
    %554 = vmatpush1.msra.mxu0 0.0
    %555 = vmatprep.subr.mxu0 0.0
    %556 = vmatpush1.msra.mxu0 0.0
    %557 = vmatprep.subr.mxu0 0.0
    %558 = vmatpush1.msra.mxu0 0.0
    %559 = vmatprep.subr.mxu0 0.0
    %560 = vmatpush1.msra.mxu0 0.0
    %561 = vmatprep.subr.mxu0 0.0
    %562 = vmatpush1.msra.mxu0 0.0
    %563 = vmatprep.subr.mxu0 0.0
    %564 = vmatpush1.msra.mxu0 0.0
    %565 = vmatprep.subr.mxu0 0.0
    %566 = vmatpush1.msra.mxu0 0.0
    %567 = vmatprep.subr.mxu0 0.0
    %568 = vmatpush1.msra.mxu0 0.0
    %569 = vmatprep.subr.mxu0 0.0
    %570 = vmatpush1.msra.mxu0 0.0
    %571 = vmatprep.subr.mxu0 0.0
    %572 = vmatpush1.msra.mxu0 0.0
    %573 = vmatprep.subr.mxu0 0.0
    %574 = vmatpush1.msra.mxu0 0.0
    %575 = vmatprep.subr.mxu0 0.0
    %576 = vmatpush1.msra.mxu0 0.0
    %577 = vmatprep.subr.mxu0 0.0
    %578 = vmatpush1.msra.mxu0 0.0
    %579 = vmatprep.subr.mxu0 0.0
    %580 = vmatpush1.msra.mxu0 0.0
    %581 = vmatprep.subr.mxu0 0.0
    %582 = vmatpush1.msra.mxu0 0.0
    %583 = vmatprep.subr.mxu0 0.0
    %584 = vmatpush1.msra.mxu0 0.0
    %585 = vmatprep.subr.mxu0 0.0
    %586 = vmatpush1.msra.mxu0 0.0
    %587 = vmatprep.subr.mxu0 0.0
    %588 = vmatpush1.msra.mxu0 0.0
    %589 = vmatprep.subr.mxu0 0.0
    %590 = vmatpush1.msra.mxu0 0.0
    %591 = vmatprep.subr.mxu0 0.0
    %592 = vmatpush1.msra.mxu0 0.0
    %593 = vmatprep.subr.mxu0 0.0
    %594 = vmatpush1.msra.mxu0 0.0
    %595 = vmatprep.subr.mxu0 0.0
    %596 = vmatpush1.msra.mxu0 0.0
    %597 = vmatprep.subr.mxu0 0.0
    %598 = vmatpush1.msra.mxu0 0.0
    %599 = vmatprep.subr.mxu0 0.0
    %600 = vmatpush1.msra.mxu0 0.0
    %601 = vmatprep.subr.mxu0 0.0
    %602 = vmatpush1.msra.mxu0 0.0
    %603 = vmatprep.subr.mxu0 0.0
    %604 = vmatpush1.msra.mxu0 0.0
    %605 = vmatprep.subr.mxu0 0.0
    %606 = vmatpush1.msra.mxu0 0.0
    %607 = vmatprep.subr.mxu0 0.0
    %608 = vmatpush1.msra.mxu0 0.0
    %609 = vmatprep.subr.mxu0 0.0
    %610 = vmatpush1.msra.mxu0 0.0
    %611 = vmatprep.subr.mxu0 0.0
    %612 = vmatpush1.msra.mxu0 0.0
    %613 = vmatprep.subr.mxu0 0.0
    %614 = vmatpush1.msra.mxu0 0.0
    %615 = vmatprep.mubr.f32.mxu0 0.0
    %616 = vmatmul.mubr.f32.gmra.mrb[0].mxu0 %v549
    %v617 = vpop.f32.mrb[0].mxu0
    %v618 = vadd.f32 0.0, %v617
    %v619 = vpop.f32.mrb[0].mxu0
    %620 = vdwg.mxu0
    %v622 = vsel %vm525, %v547, 0
    %624 = vmatprep.subr.mxu0 0.0
    %625 = vmatpush1.msra.mxu0 %v375
    %626 = vmatprep.subr.mxu0 0.0
    %627 = vmatpush1.msra.mxu0 0.0
    %628 = vmatprep.subr.mxu0 0.0
    %629 = vmatpush1.msra.mxu0 0.0
    %630 = vmatprep.subr.mxu0 0.0
    %631 = vmatpush1.msra.mxu0 0.0
    %632 = vmatprep.subr.mxu0 0.0
    %633 = vmatpush1.msra.mxu0 0.0
    %634 = vmatprep.subr.mxu0 0.0
    %635 = vmatpush1.msra.mxu0 0.0
    %636 = vmatprep.subr.mxu0 0.0
    %637 = vmatpush1.msra.mxu0 0.0
    %638 = vmatprep.subr.mxu0 0.0
    %639 = vmatpush1.msra.mxu0 0.0
    %640 = vmatprep.subr.mxu0 0.0
    %641 = vmatpush1.msra.mxu0 0.0
    %642 = vmatprep.subr.mxu0 0.0
    %643 = vmatpush1.msra.mxu0 0.0
    %644 = vmatprep.subr.mxu0 0.0
    %645 = vmatpush1.msra.mxu0 0.0
    %646 = vmatprep.subr.mxu0 0.0
    %647 = vmatpush1.msra.mxu0 0.0
    %648 = vmatprep.subr.mxu0 0.0
    %649 = vmatpush1.msra.mxu0 0.0
    %650 = vmatprep.subr.mxu0 0.0
    %651 = vmatpush1.msra.mxu0 0.0
    %652 = vmatprep.subr.mxu0 0.0
    %653 = vmatpush1.msra.mxu0 0.0
    %654 = vmatprep.subr.mxu0 0.0
    %655 = vmatpush1.msra.mxu0 0.0
    %656 = vmatprep.subr.mxu0 0.0
    %657 = vmatpush1.msra.mxu0 0.0
    %658 = vmatprep.subr.mxu0 0.0
    %659 = vmatpush1.msra.mxu0 0.0
    %660 = vmatprep.subr.mxu0 0.0
    %661 = vmatpush1.msra.mxu0 0.0
    %662 = vmatprep.subr.mxu0 0.0
    %663 = vmatpush1.msra.mxu0 0.0
    %664 = vmatprep.subr.mxu0 0.0
    %665 = vmatpush1.msra.mxu0 0.0
    %666 = vmatprep.subr.mxu0 0.0
    %667 = vmatpush1.msra.mxu0 0.0
    %668 = vmatprep.subr.mxu0 0.0
    %669 = vmatpush1.msra.mxu0 0.0
    %670 = vmatprep.subr.mxu0 0.0
    %671 = vmatpush1.msra.mxu0 0.0
    %672 = vmatprep.subr.mxu0 0.0
    %673 = vmatpush1.msra.mxu0 0.0
    %674 = vmatprep.subr.mxu0 0.0
    %675 = vmatpush1.msra.mxu0 0.0
    %676 = vmatprep.subr.mxu0 0.0
    %677 = vmatpush1.msra.mxu0 0.0
    %678 = vmatprep.subr.mxu0 0.0
    %679 = vmatpush1.msra.mxu0 0.0
    %680 = vmatprep.subr.mxu0 0.0
    %681 = vmatpush1.msra.mxu0 0.0
    %682 = vmatprep.subr.mxu0 0.0
    %683 = vmatpush1.msra.mxu0 0.0
    %684 = vmatprep.subr.mxu0 0.0
    %685 = vmatpush1.msra.mxu0 0.0
    %686 = vmatprep.subr.mxu0 0.0
    %687 = vmatpush1.msra.mxu0 0.0
    %688 = vmatprep.mubr.f32.mxu0 0.0
    %689 = vmatmul.mubr.f32.gmra.mrb[0].mxu0 %v622
    %v690 = vpop.f32.mrb[0].mxu0
    %v691 = vadd.f32 0.0, %v690
    %v692 = vpop.f32.mrb[0].mxu0
    %693 = vdwg.mxu0
    %694 = vmatprep.subr.mxu0 0.0
    %695 = vmatpush1.msra.mxu0 %v142
    %696 = vmatprep.subr.mxu0 0.0
    %697 = vmatpush1.msra.mxu0 %v143
    %698 = vmatprep.subr.mxu0 0.0
    %699 = vmatpush1.msra.mxu0 %v144
    %700 = vmatprep.subr.mxu0 0.0
    %701 = vmatpush1.msra.mxu0 %v145
    %702 = vmatprep.subr.mxu0 0.0
    %703 = vmatpush1.msra.mxu0 %v146
    %704 = vmatprep.subr.mxu0 0.0
    %705 = vmatpush1.msra.mxu0 %v147
    %706 = vmatprep.subr.mxu0 0.0
    %707 = vmatpush1.msra.mxu0 %v148
    %708 = vmatprep.subr.mxu0 0.0
    %709 = vmatpush1.msra.mxu0 %v149
    %710 = vmatprep.subr.mxu0 0.0
    %711 = vmatpush1.msra.mxu0 %v150
    %712 = vmatprep.subr.mxu0 0.0
    %713 = vmatpush1.msra.mxu0 %v151
    %714 = vmatprep.subr.mxu0 0.0
    %715 = vmatpush1.msra.mxu0 %v152
    %716 = vmatprep.subr.mxu0 0.0
    %717 = vmatpush1.msra.mxu0 %v153
    %718 = vmatprep.subr.mxu0 0.0
    %719 = vmatpush1.msra.mxu0 %v154
    %720 = vmatprep.subr.mxu0 0.0
    %721 = vmatpush1.msra.mxu0 %v155
    %722 = vmatprep.subr.mxu0 0.0
    %723 = vmatpush1.msra.mxu0 %v156
    %724 = vmatprep.subr.mxu0 0.0
    %725 = vmatpush1.msra.mxu0 %v157
    %726 = vmatprep.subr.mxu0 0.0
    %727 = vmatpush1.msra.mxu0 0.0
    %728 = vmatprep.subr.mxu0 0.0
    %729 = vmatpush1.msra.mxu0 0.0
    %730 = vmatprep.subr.mxu0 0.0
    %731 = vmatpush1.msra.mxu0 0.0
    %732 = vmatprep.subr.mxu0 0.0
    %733 = vmatpush1.msra.mxu0 0.0
    %734 = vmatprep.subr.mxu0 0.0
    %735 = vmatpush1.msra.mxu0 0.0
    %736 = vmatprep.subr.mxu0 0.0
    %737 = vmatpush1.msra.mxu0 0.0
    %738 = vmatprep.subr.mxu0 0.0
    %739 = vmatpush1.msra.mxu0 0.0
    %740 = vmatprep.subr.mxu0 0.0
    %741 = vmatpush1.msra.mxu0 0.0
    %742 = vmatprep.subr.mxu0 0.0
    %743 = vmatpush1.msra.mxu0 0.0
    %744 = vmatprep.subr.mxu0 0.0
    %745 = vmatpush1.msra.mxu0 0.0
    %746 = vmatprep.subr.mxu0 0.0
    %747 = vmatpush1.msra.mxu0 0.0
    %748 = vmatprep.subr.mxu0 0.0
    %749 = vmatpush1.msra.mxu0 0.0
    %750 = vmatprep.subr.mxu0 0.0
    %751 = vmatpush1.msra.mxu0 0.0
    %752 = vmatprep.subr.mxu0 0.0
    %753 = vmatpush1.msra.mxu0 0.0
    %754 = vmatprep.subr.mxu0 0.0
    %755 = vmatpush1.msra.mxu0 0.0
    %756 = vmatprep.subr.mxu0 0.0
    %757 = vmatpush1.msra.mxu0 0.0
    %758 = vmatprep.mubr.f32.mxu0 0.0
    %759 = vmatmul.mubr.f32.gmra.mrb[0].mxu0 %v618
    %v760 = vpop.f32.mrb[0].mxu0
    %v761 = vadd.f32 0.0, %v760
    %v762 = vpop.f32.mrb[0].mxu0
    %763 = vmatprep.mubr.f32.mxu0 0.0
    %764 = vmatmul.mubr.f32.gmra.mrb[0].mxu0 %v691
    %v765 = vpop.f32.mrb[0].mxu0
    %v766 = vadd.f32 0.0, %v765
    %v767 = vpop.f32.mrb[0].mxu0
    %768 = vdwg.mxu0
    %v769 = vlaneseq
    %v770 = vshrl.u32 %v769, 7
    %v771 = vsub.s32 0, %v770
    %v772 = vrot.slane %v55, %v771
    %v773 = vadd.f32 %v761, %v772
    %v774 = vadd.f32 %v766, %v772
    %v775 = vadd.f32 %v49, %v773
    %v776 = vadd.f32 %v50, %v774
    %777 = vadd.xlane.f32.xlu0 %v775
    %v778 = vpop.xlane.xlu0 %777
    %779 = vadd.xlane.f32.xlu0 %v776
    %v780 = vpop.xlane.xlu0 %779
    %v781 = vmul.f32 %v778, 0.023809524
    %v782 = vmul.f32 %v780, 0.023809524
    %v783 = vsub.f32 %v775, %v781
    %v784 = vsub.f32 %v776, %v782
    %v785 = vmul.f32 %v783, %v61
    %v786 = vmul.f32 %v784, %v61
    %v787 = vmul.f32 %v785, %v785
    %v788 = vmul.f32 %v786, %v786
    %789 = vadd.xlane.f32.xlu0 %v787
    %v790 = vpop.xlane.xlu0 %789
    %791 = vadd.xlane.f32.xlu0 %v788
    %v792 = vpop.xlane.xlu0 %791
    %v793 = vmul.f32 %v790, 0.023809524
    %v794 = vmul.f32 %v792, 0.023809524
    %v795 = vadd.f32 %v793, 1e-05
    %v796 = vadd.f32 %v794, 1e-05
    %v797 = vrsqrt.pop %v795
    %v798 = vrsqrt.pop %v796
    %v799 = vmul.f32 %v785, %v797
    %v800 = vmul.f32 %v786, %v798
    %v801 = vlaneseq
    %v802 = vshrl.u32 %v801, 7
    %v803 = vsub.s32 0, %v802
    %v804 = vrot.slane %v53, %v803
    %v805 = vmul.f32 %v799, %v804
    %v806 = vmul.f32 %v800, %v804
    %v807 = vlaneseq
    %v808 = vshrl.u32 %v807, 7
    %v809 = vsub.s32 0, %v808
    %v810 = vrot.slane %v54, %v809
    %v811 = vadd.f32 %v805, %v810
    %v812 = vadd.f32 %v806, %v810
    %v813 = vld [vmem:[%s2] sm:$0x3]
    %v815 = vlaneseq
    %v816 = vshrl.u32 %v815, 7
    %v817 = vsub.s32 0, %v816
    %v818 = vrot.slane %v813, %v817
    %v819 = vlaneseq
    %v820 = vshrl.u32 %v819, 7
    %v821 = vsub.s32 1, %v820
    %v822 = vrot.slane %v813, %v821
    %825 = vmatprep.subr.mxu0 %v66
    %826 = vmatpush1.msra.mxu0 %v65
    %827 = vmatprep.subr.mxu0 %v71
    %828 = vmatpush1.msra.mxu0 %v70
    %829 = vmatprep.subr.mxu0 %v76
    %830 = vmatpush1.msra.mxu0 %v75
    %831 = vmatprep.subr.mxu0 %v81
    %832 = vmatpush1.msra.mxu0 %v80
    %833 = vmatprep.subr.mxu0 %v86
    %834 = vmatpush1.msra.mxu0 %v85
    %835 = vmatprep.subr.mxu0 %v91
    %836 = vmatpush1.msra.mxu0 %v90
    %837 = vmatprep.subr.mxu0 %v96
    %838 = vmatpush1.msra.mxu0 %v95
    %839 = vmatprep.subr.mxu0 %v101
    %840 = vmatpush1.msra.mxu0 %v100
    %841 = vmatprep.subr.mxu0 %v106
    %842 = vmatpush1.msra.mxu0 %v105
    %843 = vmatprep.subr.mxu0 %v111
    %844 = vmatpush1.msra.mxu0 %v110
    %845 = vmatprep.subr.mxu0 %v116
    %846 = vmatpush1.msra.mxu0 %v115
    %847 = vmatprep.subr.mxu0 %v121
    %848 = vmatpush1.msra.mxu0 %v120
    %849 = vmatprep.subr.mxu0 %v126
    %850 = vmatpush1.msra.mxu0 %v125
    %851 = vmatprep.subr.mxu0 %v131
    %852 = vmatpush1.msra.mxu0 %v130
    %853 = vmatprep.subr.mxu0 %v136
    %854 = vmatpush1.msra.mxu0 %v135
    %855 = vmatprep.subr.mxu0 %v141
    %856 = vmatpush1.msra.mxu0 %v140
    %857 = vmatprep.subr.mxu0 0.0
    %858 = vmatpush1.msra.mxu0 0.0
    %859 = vmatprep.subr.mxu0 0.0
    %860 = vmatpush1.msra.mxu0 0.0
    %861 = vmatprep.subr.mxu0 0.0
    %862 = vmatpush1.msra.mxu0 0.0
    %863 = vmatprep.subr.mxu0 0.0
    %864 = vmatpush1.msra.mxu0 0.0
    %865 = vmatprep.subr.mxu0 0.0
    %866 = vmatpush1.msra.mxu0 0.0
    %867 = vmatprep.subr.mxu0 0.0
    %868 = vmatpush1.msra.mxu0 0.0
    %869 = vmatprep.subr.mxu0 0.0
    %870 = vmatpush1.msra.mxu0 0.0
    %871 = vmatprep.subr.mxu0 0.0
    %872 = vmatpush1.msra.mxu0 0.0
    %873 = vmatprep.subr.mxu0 0.0
    %874 = vmatpush1.msra.mxu0 0.0
    %875 = vmatprep.subr.mxu0 0.0
    %876 = vmatpush1.msra.mxu0 0.0
    %877 = vmatprep.subr.mxu0 0.0
    %878 = vmatpush1.msra.mxu0 0.0
    %879 = vmatprep.subr.mxu0 0.0
    %880 = vmatpush1.msra.mxu0 0.0
    %881 = vmatprep.subr.mxu0 0.0
    %882 = vmatpush1.msra.mxu0 0.0
    %883 = vmatprep.subr.mxu0 0.0
    %884 = vmatpush1.msra.mxu0 0.0
    %885 = vmatprep.subr.mxu0 0.0
    %886 = vmatpush1.msra.mxu0 0.0
    %887 = vmatprep.subr.mxu0 0.0
    %888 = vmatpush1.msra.mxu0 0.0
    %889 = vmatprep.mubr.f32.mxu0 0.0
    %890 = vmatmul.mubr.f32.gmra.mrb[0].mxu0 %v811
    %v891 = vpop.f32.mrb[0].mxu0
    %v892 = vadd.f32 %v818, %v891
    %v893 = vpop.f32.mrb[0].mxu0
    %v894 = vadd.f32 %v822, %v893
    %895 = vmatprep.mubr.f32.mxu0 0.0
    %896 = vmatmul.mubr.f32.gmra.mrb[0].mxu0 %v812
    %v897 = vpop.f32.mrb[0].mxu0
    %v898 = vadd.f32 %v818, %v897
    %v899 = vpop.f32.mrb[0].mxu0
    %v900 = vadd.f32 %v822, %v899
    %901 = vdwg.mxu0
    %v902 = vmul.f32 %v892, 0.5
    %v903 = vmul.f32 %v894, 0.5
    %v904 = vmul.f32 %v898, 0.5
    %v905 = vmul.f32 %v900, 0.5
    %v906 = vmul.f32 %v892, 0.044715
    %v907 = vmul.f32 %v894, 0.044715
    %v908 = vmul.f32 %v898, 0.044715
    %v909 = vmul.f32 %v900, 0.044715
    %v910 = vmul.f32 %v906, %v892
    %v911 = vmul.f32 %v907, %v894
    %v912 = vmul.f32 %v908, %v898
    %v913 = vmul.f32 %v909, %v900
    %v914 = vmul.f32 %v910, %v892
    %v915 = vmul.f32 %v911, %v894
    %v916 = vmul.f32 %v912, %v898
    %v917 = vmul.f32 %v913, %v900
    %v918 = vadd.f32 %v892, %v914
    %v919 = vadd.f32 %v894, %v915
    %v920 = vadd.f32 %v898, %v916
    %v921 = vadd.f32 %v900, %v917
    %v922 = vmul.f32 %v918, 0.7978846
    %v923 = vmul.f32 %v919, 0.7978846
    %v924 = vmul.f32 %v920, 0.7978846
    %v925 = vmul.f32 %v921, 0.7978846
    %v926 = vtanh.pop %v922
    %v927 = vtanh.pop %v923
    %v928 = vtanh.pop %v924
    %v929 = vtanh.pop %v925
    %v930 = vadd.f32 %v926, 1.0
    %v931 = vadd.f32 %v927, 1.0
    %v932 = vadd.f32 %v928, 1.0
    %v933 = vadd.f32 %v929, 1.0
    %v934 = vmul.f32 %v902, %v930
    %v935 = vmul.f32 %v903, %v931
    %v936 = vmul.f32 %v904, %v932
    %v937 = vmul.f32 %v905, %v933
    %938 = vmatprep.subr.mxu0 0.0
    %939 = vmatpush1.msra.mxu0 %v158
    %940 = vmatprep.subr.mxu0 0.0
    %941 = vmatpush1.msra.mxu0 %v159
    %942 = vmatprep.subr.mxu0 0.0
    %943 = vmatpush1.msra.mxu0 %v160
    %944 = vmatprep.subr.mxu0 0.0
    %945 = vmatpush1.msra.mxu0 %v161
    %946 = vmatprep.subr.mxu0 0.0
    %947 = vmatpush1.msra.mxu0 %v162
    %948 = vmatprep.subr.mxu0 0.0
    %949 = vmatpush1.msra.mxu0 %v163
    %950 = vmatprep.subr.mxu0 0.0
    %951 = vmatpush1.msra.mxu0 %v164
    %952 = vmatprep.subr.mxu0 0.0
    %953 = vmatpush1.msra.mxu0 %v165
    %954 = vmatprep.subr.mxu0 0.0
    %955 = vmatpush1.msra.mxu0 %v166
    %956 = vmatprep.subr.mxu0 0.0
    %957 = vmatpush1.msra.mxu0 %v167
    %958 = vmatprep.subr.mxu0 0.0
    %959 = vmatpush1.msra.mxu0 %v168
    %960 = vmatprep.subr.mxu0 0.0
    %961 = vmatpush1.msra.mxu0 %v169
    %962 = vmatprep.subr.mxu0 0.0
    %963 = vmatpush1.msra.mxu0 %v170
    %964 = vmatprep.subr.mxu0 0.0
    %965 = vmatpush1.msra.mxu0 %v171
    %966 = vmatprep.subr.mxu0 0.0
    %967 = vmatpush1.msra.mxu0 %v172
    %968 = vmatprep.subr.mxu0 0.0
    %969 = vmatpush1.msra.mxu0 %v173
    %970 = vmatprep.subr.mxu0 0.0
    %971 = vmatpush1.msra.mxu0 %v174
    %972 = vmatprep.subr.mxu0 0.0
    %973 = vmatpush1.msra.mxu0 %v175
    %974 = vmatprep.subr.mxu0 0.0
    %975 = vmatpush1.msra.mxu0 %v176
    %976 = vmatprep.subr.mxu0 0.0
    %977 = vmatpush1.msra.mxu0 %v177
    %978 = vmatprep.subr.mxu0 0.0
    %979 = vmatpush1.msra.mxu0 %v178
    %980 = vmatprep.subr.mxu0 0.0
    %981 = vmatpush1.msra.mxu0 %v179
    %982 = vmatprep.subr.mxu0 0.0
    %983 = vmatpush1.msra.mxu0 %v180
    %984 = vmatprep.subr.mxu0 0.0
    %985 = vmatpush1.msra.mxu0 %v181
    %986 = vmatprep.subr.mxu0 0.0
    %987 = vmatpush1.msra.mxu0 %v182
    %988 = vmatprep.subr.mxu0 0.0
    %989 = vmatpush1.msra.mxu0 %v183
    %990 = vmatprep.subr.mxu0 0.0
    %991 = vmatpush1.msra.mxu0 %v184
    %992 = vmatprep.subr.mxu0 0.0
    %993 = vmatpush1.msra.mxu0 %v185
    %994 = vmatprep.subr.mxu0 0.0
    %995 = vmatpush1.msra.mxu0 %v186
    %996 = vmatprep.subr.mxu0 0.0
    %997 = vmatpush1.msra.mxu0 %v187
    %998 = vmatprep.subr.mxu0 0.0
    %999 = vmatpush1.msra.mxu0 %v188
    %1000 = vmatprep.subr.mxu0 0.0
    %1001 = vmatpush1.msra.mxu0 %v189
    %1002 = vmatprep.mubr.f32.mxu0 %v935
    %1003 = vmatmul.mubr.f32.gmra.mrb[0].mxu0 %v934
    %v1004 = vpop.f32.mrb[0].mxu0
    %v1005 = vadd.f32 0.0, %v1004
    %v1006 = vpop.f32.mrb[0].mxu0
    %1007 = vmatprep.mubr.f32.mxu0 %v937
    %1008 = vmatmul.mubr.f32.gmra.mrb[0].mxu0 %v936
    %v1009 = vpop.f32.mrb[0].mxu0
    %v1010 = vadd.f32 0.0, %v1009
    %v1011 = vpop.f32.mrb[0].mxu0
    %1012 = vdwg.mxu0
    %v1013 = vlaneseq
    %v1014 = vshrl.u32 %v1013, 7
    %v1015 = vsub.s32 0, %v1014
    %v1016 = vrot.slane %v56, %v1015
    %v1017 = vadd.f32 %v1005, %v1016
    %v1018 = vadd.f32 %v1010, %v1016
    %v1019 = vadd.f32 %v775, %v1017
    %v1020 = vadd.f32 %v776, %v1018
    %1021 = vst [vmem:[#allocation7] sm:$0xff] %v1019
    %1022 = vst [vmem:[#allocation7 + $0x8] sm:$0xff] %v1020
    // Predicated region
    $region30: #{_forward.1} parent=1 // pred_check
      _
    $region31: #{_forward.1} parent=1 // pred_check_branch
      %1024 = sbr.rel (0) target = $region33
    $region32: #{_forward.1} parent=1 // pred_region
      %s1026 = ssub.s32 256, 256
      %1027 = vsyncadd [#allocation4], %s1026
      %s1028 = sshll.u32 [#allocation7], 4
      %s1029 = int_to_ptr.vmem [resolvable:$true] %s1028
      %1034 = dma.vmem_to_hbm [thread:$0]  %s1029, 256, %s5, [#allocation4], 128, 128, 8
    $region33: #{_forward.1} parent=1 // pred_fallthru
      _
    // Predicated region
    $region34: #{_forward.1} parent=1 // pred_check
      _
    $region35: #{_forward.1} parent=1 // pred_check_branch
      %1036 = sbr.rel (0) target = $region37
    $region36: #{_forward.1} parent=1 // pred_region
      %1037 = dma.done [#allocation4], 256
    $region37: #{_forward.1} parent=1 // pred_fallthru
      _
    %1038 = vsyncpa [#allocation3], 1
    %1039 = vsyncpa [#allocation6], 1
    %1040 = vsyncpa [#allocation4], 1

</llo_original>
